<compile_context>
chip_gen: v5e
topology: v5e:2x2
jax: 0.10.0
libtpu: 0.0.40
codegen_flags: <defaults>
</compile_context>

<pallas_src>
import jax
import jax.numpy as jnp
from jax.experimental import pallas as pl
from jax.experimental.pallas import tpu as pltpu


OUT_LANES = 128  # lane-dense output slab width


# ----------------------------------------------------------------------------
# Fused kernel: masked-sum accumulation over time tiles + (on last tile)
# mean finalize, judge add, and both MLP heads as packed matmuls.
# ----------------------------------------------------------------------------
def fused_kernel(nvalid_ref, len_ref, feat_ref, judge_ref,
                 w1_ref, b1_ref, w2_ref, b2_ref, wo_ref, bo_ref,
                 out_ref, acc_ref):
    t = pl.program_id(1)
    n_valid = nvalid_ref[0]                    # number of time tiles with any valid data

    @pl.when(t == 0)
    def _init():
        acc_ref[...] = jnp.zeros_like(acc_ref)

    @pl.when(t < n_valid)
    def _accumulate():
        # Widen to f32 BEFORE masking so bf16 I/O still accumulates cleanly in f32.
        feat = feat_ref[...].astype(jnp.float32)            # [Bt, TT, D]
        lens = len_ref[...]                                  # [Bt, 1] int32
        Bt, TT, _ = feat.shape

        # Valid-time mask for this tile (global time index = t*TT + local).
        t_idx = jax.lax.broadcasted_iota(jnp.int32, (Bt, TT, 1), 1) + t * TT
        mask = t_idx < lens[:, None, :]                      # [Bt, TT, 1] bool

        # jnp.where (not feat*mask): the last tile may be a partial/OOB block
        # whose tail rows are stale VMEM garbage -- 0*NaN would poison the sum.
        acc_ref[...] += jnp.sum(jnp.where(mask, feat, 0.0), axis=1)
        # TODO(synk): if profiling shows the vld/VALU slot binding at large D,
        # fuse mask+reduce into a batched dot_general ('b1t,btd->b1d') so the
        # time reduction runs on the otherwise-idle MXU.

    @pl.when(t == pl.num_programs(1) - 1)
    def _finalize():
        # Clamp to >= 1 so zero-length utterances don't produce inf/nan.
        lens_f = jnp.maximum(len_ref[...], 1).astype(jnp.float32)   # [Bt, 1]
        inv_len = pl.reciprocal(lens_f, approx=True)                # EUP slot, ~free
        # mean(feat + judge) == mean(feat) + judge (judge added once per row).
        pooled = acc_ref[...] * inv_len + judge_ref[...]            # [Bt, D]

        # Both heads fused: concat layer-1, block-diagonal layer-2, packed output.
        h = jnp.dot(pooled, w1_ref[...], preferred_element_type=jnp.float32) + b1_ref[...]
        h = jnp.maximum(h, 0.0)                                     # ReLU (Dropout = id)
        h = jnp.dot(h, w2_ref[...], preferred_element_type=jnp.float32) + b2_ref[...]
        h = jnp.maximum(h, 0.0)
        out = jnp.dot(h, wo_ref[...], preferred_element_type=jnp.float32) + bo_ref[...]
        out_ref[...] = out                                          # [Bt, 128] lane-dense


def _const_spec(shape):
    nd = len(shape)
    return pl.BlockSpec(shape, lambda *_: (0,) * nd)


# ----------------------------------------------------------------------------
# Parameter packing: fuse the two heads' weights into three matmuls + a
# lane-dense (128-wide) output projection.
# ----------------------------------------------------------------------------
def pack_params(params):
    w1r, b1r, w2r, b2r, wor, bor = params["regression"]
    w1c, b1c, w2c, b2c, woc, boc = params["classification"]
    D, H0 = w1r.shape
    H1 = w2r.shape[1]
    R = wor.shape[1]          # regression output size (1)
    C = woc.shape[1]          # classification output size
    assert R + C <= OUT_LANES

    W1 = jnp.concatenate([w1r, w1c], axis=1)                    # [D, 2*H0]
    B1 = jnp.concatenate([b1r, b1c], axis=1)                    # [1, 2*H0]

    W2 = jnp.zeros((2 * H0, 2 * H1), jnp.float32)
    W2 = W2.at[:H0, :H1].set(w2r).at[H0:, H1:].set(w2c)         # block-diagonal
    B2 = jnp.concatenate([b2r, b2c], axis=1)                    # [1, 2*H1]

    WO = jnp.zeros((2 * H1, OUT_LANES), jnp.float32)
    WO = WO.at[:H1, :R].set(wor).at[H1:, R:R + C].set(woc)      # packed output proj
    BO = jnp.zeros((1, OUT_LANES), jnp.float32)
    BO = BO.at[:, :R].set(bor).at[:, R:R + C].set(boc)

    return {
        "judge_embedding": params["judge_embedding"],
        "W1": W1, "B1": B1, "W2": W2, "B2": B2, "WO": WO, "BO": BO,
        "reg_out": R, "cls_out": C,
    }


# ----------------------------------------------------------------------------
# Full forward: one pallas_call (embedding gather stays as tiny JAX glue).
# ----------------------------------------------------------------------------
def model_forward(packed, features, features_len, judge_ids, *,
                  t_block=512, b_block=None):
    """features: [B, T, D] in f32 or bf16.  Pass bf16 directly when the upstream
    producer emits bf16 (halves the dominant HBM read); the kernel widens to f32
    before masking/accumulating, so results stay f32-accumulated on all chips.
    b_block: batch tile (must divide B; B itself, or a multiple of 8).  Splitting
    the batch + the "parallel" grid axis lets v7x's two TensorCores both run."""
    assert t_block >= 8
    B, T, D = features.shape
    if b_block is None:
        b_block = B
    assert B % b_block == 0 and (b_block == B or b_block % 8 == 0)
    nB = B // b_block

    # Judge embedding gather — tiny [B, D] XLA gather kept in the wrapper.
    judge_emb = jnp.take(packed["judge_embedding"], judge_ids, axis=0).astype(jnp.float32)
    lens = features_len.reshape(B, 1).astype(jnp.int32)

    W1, B1, W2, B2, WO, BO = (packed[k] for k in ("W1", "B1", "W2", "B2", "WO", "BO"))

    # ---- VMEM budget: size the time tile against the device VMEM capacity ----
    itemsize = features.dtype.itemsize
    const_bytes = sum(int(x.size) * x.dtype.itemsize for x in (W1, B1, W2, B2, WO, BO))
    const_bytes += int(judge_emb.size) * 4 + int(lens.size) * 4
    const_bytes += b_block * D * 4 + 2 * b_block * OUT_LANES * 4       # acc scratch + out
    try:
        vmem_cap = int(pltpu.get_tpu_info().vmem_capacity_bytes)       # 64 MiB on v7x, 128 MiB on v5e/v6e
    except Exception:
        vmem_cap = 64 << 20                                            # conservative fallback
    feat_budget = max(vmem_cap - 2 * const_bytes - (8 << 20), 4 << 20)

    TT = min(t_block, T)
    if TT < T:
        TT = max(8, (TT // 8) * 8)           # (8,128) tiling rule on the time dim
    while 2 * b_block * TT * D * itemsize > feat_budget and TT > 8:
        TT = max(8, ((TT // 2) // 8) * 8)    # shrink until double-buffered block fits
    nT = pl.cdiv(T, TT)                      # NO jnp.pad: last block may be partial

    # Scalar-prefetch: number of time tiles containing any valid timestep.
    max_len = jnp.max(features_len).astype(jnp.int32)
    n_valid = ((max_len + TT - 1) // TT).reshape(1)

    # Features index_map clamps to the last valid tile so fully-padded tail
    # tiles re-use the same block index => no DMA (and the accumulate is skipped).
    feat_spec = pl.BlockSpec(
        (b_block, TT, D),
        lambda b, t, nv: (b, jnp.minimum(t, jnp.maximum(nv[0], 1) - 1), 0))

    vmem_limit = int(2 * b_block * TT * D * itemsize + 2 * const_bytes + (4 << 20))
    vmem_limit = min(max(vmem_limit, 32 << 20), vmem_cap)

    out = pl.pallas_call(
        fused_kernel,
        out_shape=jax.ShapeDtypeStruct((B, OUT_LANES), jnp.float32),
        grid_spec=pltpu.PrefetchScalarGridSpec(
            num_scalar_prefetch=1,
            grid=(nB, nT),
            in_specs=[
                pl.BlockSpec((b_block, 1), lambda b, t, nv: (b, 0)),        # lens
                feat_spec,                                                   # features (B,T)-tiled
                pl.BlockSpec((b_block, D), lambda b, t, nv: (b, 0)),        # judge embedding
                _const_spec(W1.shape), _const_spec(B1.shape),
                _const_spec(W2.shape), _const_spec(B2.shape),
                _const_spec(WO.shape), _const_spec(BO.shape),
            ],
            out_specs=pl.BlockSpec((b_block, OUT_LANES), lambda b, t, nv: (b, 0)),
            scratch_shapes=[pltpu.VMEM((b_block, D), jnp.float32)],          # pooled-sum accumulator
        ),
        compiler_params=pltpu.CompilerParams(
            dimension_semantics=("parallel", "arbitrary"),   # batch sharded on v7x megacore
            vmem_limit_bytes=vmem_limit,
        ),
    )(n_valid, lens, features, judge_emb, W1, B1, W2, B2, WO, BO)

    R, C = packed["reg_out"], packed["cls_out"]
    scores = out[:, :R]
    logits = out[:, R:R + C]
    if R == 1:
        scores = scores[:, 0]            # .squeeze(-1)
    if C == 1:
        logits = logits[:, 0]            # .squeeze(-1) (no-op when C != 1)
    return scores, logits


# ----------------------------------------------------------------------------
# Parameter init (per-head, torch-like layout transposed to [in, out])
# ----------------------------------------------------------------------------
def init_params(key, input_size, dims, reg_out, cls_out, num_judges):
    ks = jax.random.split(key, 3)

    def linear(kw, kb, fan_in, fan_out):
        w = jax.random.normal(kw, (fan_in, fan_out), jnp.float32) * 0.05
        b = jax.random.normal(kb, (1, fan_out), jnp.float32) * 0.01
        return w, b

    def head(k0, out_size):
        kws = jax.random.split(k0, 6)
        w1, b1 = linear(kws[0], kws[1], input_size, dims[0])
        w2, b2 = linear(kws[2], kws[3], dims[0], dims[1])
        wo, bo = linear(kws[4], kws[5], dims[1], out_size)
        return (w1, b1, w2, b2, wo, bo)

    return {
        "judge_embedding": jax.random.normal(ks[0], (num_judges, input_size), jnp.float32) * 0.1,
        "regression": head(ks[1], reg_out),
        "classification": head(ks[2], cls_out),
    }


if __name__ == "__main__":
    B, T, D = 2, 200, 32        # batch, time, input_size (T > t_block to exercise tiling)
    dims = (32, 32)             # hidden dims
    REG_OUT, CLS_OUT = 1, 5
    NUM_JUDGES = 64

    key = jax.random.PRNGKey(0)
    k_feat, k_param, k_ids = jax.random.split(key, 3)

    features = jax.random.normal(k_feat, (B, T, D), jnp.float32)
    judge_ids = jax.random.randint(k_ids, (B,), 0, NUM_JUDGES, dtype=jnp.int32)

    params = init_params(k_param, D, dims, REG_OUT, CLS_OUT, NUM_JUDGES)
    packed = pack_params(params)

    # Pure-JAX reference
    def ref_forward(params, feats, feats_len, jids):
        Tr = feats.shape[1]
        judge = jnp.take(params["judge_embedding"], jids, axis=0)
        feat = feats.astype(jnp.float32) + judge[:, None, :]
        mask = (jnp.arange(Tr)[None, :, None] < feats_len[:, None, None]).astype(jnp.float32)
        pooled = jnp.sum(feat * mask, axis=1) / feats_len[:, None].astype(jnp.float32)

        def head(x, p):
            w1, b1, w2, b2, wo, bo = p
            h = jnp.maximum(x @ w1 + b1, 0.0)
            h = jnp.maximum(h @ w2 + b2, 0.0)
            return h @ wo + bo

        return (jnp.squeeze(head(pooled, params["regression"]), -1),
                head(pooled, params["classification"]))

    # Case 1: ragged (partial, OOB) last time tile actually accumulated.
    lens1 = jnp.array([T, 77], dtype=jnp.int32)
    s1, l1 = model_forward(packed, features, lens1, judge_ids, t_block=64)
    jax.block_until_ready((s1, l1))
    rs1, rl1 = ref_forward(params, features, lens1, judge_ids)
    assert s1.shape == (B,) and l1.shape == (B, CLS_OUT)
    # Tolerance covers the approx (EUP) reciprocal and blocked-vs-flat f32 summation.
    assert jnp.allclose(s1, rs1, atol=1e-3, rtol=1e-3), "scores mismatch (case 1)"
    assert jnp.allclose(l1, rl1, atol=1e-3, rtol=1e-3), "logits mismatch (case 1)"

    # Case 2: padded tail tiles skipped via the scalar-prefetch n_valid clamp.
    lens2 = jnp.array([100, 77], dtype=jnp.int32)
    s2, l2 = model_forward(packed, features, lens2, judge_ids, t_block=64)
    jax.block_until_ready((s2, l2))
    rs2, rl2 = ref_forward(params, features, lens2, judge_ids)
    assert jnp.allclose(s2, rs2, atol=1e-3, rtol=1e-3), "scores mismatch (case 2)"
    assert jnp.allclose(l2, rl2, atol=1e-3, rtol=1e-3), "logits mismatch (case 2)"

    # Case 3: bf16 feature I/O (kernel widens to f32 before masking/accumulating).
    feat_bf16 = features.astype(jnp.bfloat16)
    s3, l3 = model_forward(packed, feat_bf16, lens1, judge_ids, t_block=64)
    jax.block_until_ready((s3, l3))
    rs3, rl3 = ref_forward(params, feat_bf16.astype(jnp.float32), lens1, judge_ids)
    assert jnp.allclose(s3, rs3, atol=2e-3, rtol=2e-3), "scores mismatch (bf16)"
    assert jnp.allclose(l3, rl3, atol=2e-3, rtol=2e-3), "logits mismatch (bf16)"

    print("KERNEL_OK")
</pallas_src>

<mosaic_0001>
module attributes {stable_mosaic.version = 11 : i64} {
  func.func @fused_kernel(%arg0: i32, %arg1: i32, %arg2: memref<1xi32, #tpu.memory_space<smem>>, %arg3: memref<2x1xi32, #tpu.memory_space<vmem>>, %arg4: memref<2x64x32xf32, #tpu.memory_space<vmem>>, %arg5: memref<2x32xf32, #tpu.memory_space<vmem>>, %arg6: memref<32x64xf32, #tpu.memory_space<vmem>>, %arg7: memref<1x64xf32, #tpu.memory_space<vmem>>, %arg8: memref<64x64xf32, #tpu.memory_space<vmem>>, %arg9: memref<1x64xf32, #tpu.memory_space<vmem>>, %arg10: memref<64x128xf32, #tpu.memory_space<vmem>>, %arg11: memref<1x128xf32, #tpu.memory_space<vmem>>, %arg12: memref<2x128xf32, #tpu.memory_space<vmem>>, %arg13: memref<2x32xf32, #tpu.memory_space<vmem>>) attributes {dimension_semantics = [#tpu.dimension_semantics<parallel>, #tpu.dimension_semantics<arbitrary>], iteration_bounds = array<i64: 1, 4>, scalar_prefetch = 1 : i64, scratch_operands = 1 : i64, tpu.core_type = #tpu.core_type<tc>, window_params = [{transform_indices = @transform_0, window_bounds = array<i64: 2, 1>}, {transform_indices = @transform_1, window_bounds = array<i64: 2, 64, 32>}, {transform_indices = @transform_2, window_bounds = array<i64: 2, 32>}, {pipeline_mode = #tpu.pipeline_mode<synchronous>, transform_indices = @transform_3, window_bounds = array<i64: 32, 64>}, {pipeline_mode = #tpu.pipeline_mode<synchronous>, transform_indices = @transform_4, window_bounds = array<i64: 1, 64>}, {pipeline_mode = #tpu.pipeline_mode<synchronous>, transform_indices = @transform_5, window_bounds = array<i64: 64, 64>}, {pipeline_mode = #tpu.pipeline_mode<synchronous>, transform_indices = @transform_6, window_bounds = array<i64: 1, 64>}, {pipeline_mode = #tpu.pipeline_mode<synchronous>, transform_indices = @transform_7, window_bounds = array<i64: 64, 128>}, {pipeline_mode = #tpu.pipeline_mode<synchronous>, transform_indices = @transform_8, window_bounds = array<i64: 1, 128>}, {transform_indices = @transform_9, window_bounds = array<i64: 2, 128>}]} {
    %c0 = arith.constant 0 : index
    %0 = memref.load %arg2[%c0] : memref<1xi32, #tpu.memory_space<smem>>
    %c0_i32 = arith.constant 0 : i32
    %1 = arith.cmpi eq, %arg1, %c0_i32 : i32
    %2 = arith.extui %1 : i1 to i32
    %c0_i32_0 = arith.constant 0 : i32
    %3 = arith.cmpi ne, %2, %c0_i32_0 : i32
    scf.if %3 {
      %cst = arith.constant 0.000000e+00 : f32
      %10 = vector.broadcast %cst : f32 to vector<2x32xf32>
      %c0_3 = arith.constant 0 : index
      %c0_4 = arith.constant 0 : index
      %11 = vector.load %arg13[%c0_3, %c0_4] : memref<2x32xf32, #tpu.memory_space<vmem>>, vector<2x32xf32>
      tpu.vector_store %arg13[%c0_3, %c0_4], %10 {strides = array<i32>} : memref<2x32xf32, #tpu.memory_space<vmem>>, vector<2x32xf32>,
    } else {
    }
    %4 = arith.cmpi slt, %arg1, %0 : i32
    %5 = arith.extui %4 : i1 to i32
    %c0_i32_1 = arith.constant 0 : i32
    %6 = arith.cmpi ne, %5, %c0_i32_1 : i32
    scf.if %6 {
      %c0_3 = arith.constant 0 : index
      %c0_4 = arith.constant 0 : index
      %c0_5 = arith.constant 0 : index
      %10 = vector.load %arg4[%c0_3, %c0_4, %c0_5] : memref<2x64x32xf32, #tpu.memory_space<vmem>>, vector<2x64x32xf32>
      %c0_6 = arith.constant 0 : index
      %c0_7 = arith.constant 0 : index
      %11 = vector.load %arg3[%c0_6, %c0_7] : memref<2x1xi32, #tpu.memory_space<vmem>>, vector<2x1xi32>
      %12 = tpu.iota {dimensions = array<i32: 1>} : vector<2x64x1xi32>
      %c64_i32 = arith.constant 64 : i32
      %13 = arith.muli %arg1, %c64_i32 : i32
      %14 = vector.broadcast %13 : i32 to vector<2x64x1xi32>
      %15 = arith.addi %12, %14 : vector<2x64x1xi32>
      %16 = vector.shape_cast %11 : vector<2x1xi32> to vector<2x1x1xi32>
      %17 = vector.broadcast %16 : vector<2x1x1xi32> to vector<2x64x1xi32>
      %18 = arith.cmpi slt, %15, %17 : vector<2x64x1xi32>
      %c0_8 = arith.constant 0 : index
      %c0_9 = arith.constant 0 : index
      %19 = vector.load %arg13[%c0_8, %c0_9] : memref<2x32xf32, #tpu.memory_space<vmem>>, vector<2x32xf32>
      %cst = arith.constant 0.000000e+00 : f32
      %20 = vector.shape_cast %18 : vector<2x64x1xi1> to vector<2x64x1xi1>
      %21 = vector.broadcast %20 : vector<2x64x1xi1> to vector<2x64x32xi1>
      %22 = vector.broadcast %cst : f32 to vector<2x64x32xf32>
      %23 = arith.select %21, %10, %22 : vector<2x64x32xi1>, vector<2x64x32xf32>
      %cst_10 = arith.constant dense<0.000000e+00> : vector<2x32xf32>
      %24 = vector.multi_reduction <add>, %23, %cst_10 [1] : vector<2x64x32xf32> to vector<2x32xf32>
      %25 = arith.addf %19, %24 : vector<2x32xf32>
      %c0_11 = arith.constant 0 : index
      %c0_12 = arith.constant 0 : index
      %26 = vector.load %arg13[%c0_11, %c0_12] : memref<2x32xf32, #tpu.memory_space<vmem>>, vector<2x32xf32>
      tpu.vector_store %arg13[%c0_11, %c0_12], %25 {strides = array<i32>} : memref<2x32xf32, #tpu.memory_space<vmem>>, vector<2x32xf32>,
    } else {
    }
    %c3_i32 = arith.constant 3 : i32
    %7 = arith.cmpi eq, %arg1, %c3_i32 : i32
    %8 = arith.extui %7 : i1 to i32
    %c0_i32_2 = arith.constant 0 : i32
    %9 = arith.cmpi ne, %8, %c0_i32_2 : i32
    scf.if %9 {
      %c0_3 = arith.constant 0 : index
      %c0_4 = arith.constant 0 : index
      %10 = vector.load %arg3[%c0_3, %c0_4] : memref<2x1xi32, #tpu.memory_space<vmem>>, vector<2x1xi32>
      %c1_i32 = arith.constant 1 : i32
      %11 = vector.broadcast %c1_i32 : i32 to vector<2x1xi32>
      %12 = arith.maxsi %10, %11 : vector<2x1xi32>
      %13 = arith.sitofp %12 : vector<2x1xi32> to vector<2x1xf32>
      %14 = tpu.reciprocal %13 {approx = true} : vector<2x1xf32> -> vector<2x1xf32>
      %c0_5 = arith.constant 0 : index
      %c0_6 = arith.constant 0 : index
      %15 = vector.load %arg13[%c0_5, %c0_6] : memref<2x32xf32, #tpu.memory_space<vmem>>, vector<2x32xf32>
      %16 = vector.broadcast %14 : vector<2x1xf32> to vector<2x32xf32>
      %17 = arith.mulf %15, %16 : vector<2x32xf32>
      %c0_7 = arith.constant 0 : index
      %c0_8 = arith.constant 0 : index
      %18 = vector.load %arg5[%c0_7, %c0_8] : memref<2x32xf32, #tpu.memory_space<vmem>>, vector<2x32xf32>
      %19 = arith.addf %17, %18 : vector<2x32xf32>
      %c0_9 = arith.constant 0 : index
      %c0_10 = arith.constant 0 : index
      %20 = vector.load %arg6[%c0_9, %c0_10] : memref<32x64xf32, #tpu.memory_space<vmem>>, vector<32x64xf32>
      %cst = arith.constant dense<0.000000e+00> : vector<2x64xf32>
      %21 = tpu.matmul %19, %20, %cst {dimension_numbers = #tpu.dot_dimension_numbers<[1], [0], [0], [1], [0, 0, 1, 1], [], []>} : vector<2x32xf32>, vector<32x64xf32>, vector<2x64xf32> -> vector<2x64xf32>
      %c0_11 = arith.constant 0 : index
      %c0_12 = arith.constant 0 : index
      %22 = vector.load %arg7[%c0_11, %c0_12] : memref<1x64xf32, #tpu.memory_space<vmem>>, vector<1x64xf32>
      %23 = vector.broadcast %22 : vector<1x64xf32> to vector<2x64xf32>
      %24 = arith.addf %21, %23 : vector<2x64xf32>
      %cst_13 = arith.constant 0.000000e+00 : f32
      %25 = vector.broadcast %cst_13 : f32 to vector<2x64xf32>
      %26 = arith.maximumf %24, %25 : vector<2x64xf32>
      %c0_14 = arith.constant 0 : index
      %c0_15 = arith.constant 0 : index
      %27 = vector.load %arg8[%c0_14, %c0_15] : memref<64x64xf32, #tpu.memory_space<vmem>>, vector<64x64xf32>
      %cst_16 = arith.constant dense<0.000000e+00> : vector<2x64xf32>
      %28 = tpu.matmul %26, %27, %cst_16 {dimension_numbers = #tpu.dot_dimension_numbers<[1], [0], [0], [1], [0, 0, 1, 1], [], []>} : vector<2x64xf32>, vector<64x64xf32>, vector<2x64xf32> -> vector<2x64xf32>
      %c0_17 = arith.constant 0 : index
      %c0_18 = arith.constant 0 : index
      %29 = vector.load %arg9[%c0_17, %c0_18] : memref<1x64xf32, #tpu.memory_space<vmem>>, vector<1x64xf32>
      %30 = vector.broadcast %29 : vector<1x64xf32> to vector<2x64xf32>
      %31 = arith.addf %28, %30 : vector<2x64xf32>
      %cst_19 = arith.constant 0.000000e+00 : f32
      %32 = vector.broadcast %cst_19 : f32 to vector<2x64xf32>
      %33 = arith.maximumf %31, %32 : vector<2x64xf32>
      %c0_20 = arith.constant 0 : index
      %c0_21 = arith.constant 0 : index
      %34 = vector.load %arg10[%c0_20, %c0_21] : memref<64x128xf32, #tpu.memory_space<vmem>>, vector<64x128xf32>
      %cst_22 = arith.constant dense<0.000000e+00> : vector<2x128xf32>
      %35 = tpu.matmul %33, %34, %cst_22 {dimension_numbers = #tpu.dot_dimension_numbers<[1], [0], [0], [1], [0, 0, 1, 1], [], []>} : vector<2x64xf32>, vector<64x128xf32>, vector<2x128xf32> -> vector<2x128xf32>
      %c0_23 = arith.constant 0 : index
      %c0_24 = arith.constant 0 : index
      %36 = vector.load %arg11[%c0_23, %c0_24] : memref<1x128xf32, #tpu.memory_space<vmem>>, vector<1x128xf32>
      %37 = vector.broadcast %36 : vector<1x128xf32> to vector<2x128xf32>
      %38 = arith.addf %35, %37 : vector<2x128xf32>
      %c0_25 = arith.constant 0 : index
      %c0_26 = arith.constant 0 : index
      %39 = vector.load %arg12[%c0_25, %c0_26] : memref<2x128xf32, #tpu.memory_space<vmem>>, vector<2x128xf32>
      tpu.vector_store %arg12[%c0_25, %c0_26], %38 {strides = array<i32>} : memref<2x128xf32, #tpu.memory_space<vmem>>, vector<2x128xf32>,
    } else {
    }
    return
  }
  func.func @transform_0(%arg0: i32, %arg1: i32, %arg2: memref<1xi32, #tpu.memory_space<smem>>) -> (i32, i32) {
    %c0_i32 = arith.constant 0 : i32
    %c0_i32_0 = arith.constant 0 : i32
    return %arg0, %c0_i32 : i32, i32
  }
  func.func @transform_1(%arg0: i32, %arg1: i32, %arg2: memref<1xi32, #tpu.memory_space<smem>>) -> (i32, i32, i32) {
    %c0 = arith.constant 0 : index
    %0 = memref.load %arg2[%c0] : memref<1xi32, #tpu.memory_space<smem>>
    %c1_i32 = arith.constant 1 : i32
    %1 = arith.maxsi %0, %c1_i32 : i32
    %c1_i32_0 = arith.constant 1 : i32
    %2 = arith.subi %1, %c1_i32_0 : i32
    %3 = arith.minsi %arg1, %2 : i32
    %c0_i32 = arith.constant 0 : i32
    %c0_i32_1 = arith.constant 0 : i32
    return %arg0, %3, %c0_i32 : i32, i32, i32
  }
  func.func @transform_2(%arg0: i32, %arg1: i32, %arg2: memref<1xi32, #tpu.memory_space<smem>>) -> (i32, i32) {
    %c0_i32 = arith.constant 0 : i32
    %c0_i32_0 = arith.constant 0 : i32
    return %arg0, %c0_i32 : i32, i32
  }
  func.func @transform_3(%arg0: i32, %arg1: i32, %arg2: memref<1xi32, #tpu.memory_space<smem>>) -> (i32, i32) {
    %c0_i32 = arith.constant 0 : i32
    %c0_i32_0 = arith.constant 0 : i32
    %c0_i32_1 = arith.constant 0 : i32
    return %c0_i32, %c0_i32_0 : i32, i32
  }
  func.func @transform_4(%arg0: i32, %arg1: i32, %arg2: memref<1xi32, #tpu.memory_space<smem>>) -> (i32, i32) {
    %c0_i32 = arith.constant 0 : i32
    %c0_i32_0 = arith.constant 0 : i32
    %c0_i32_1 = arith.constant 0 : i32
    return %c0_i32, %c0_i32_0 : i32, i32
  }
  func.func @transform_5(%arg0: i32, %arg1: i32, %arg2: memref<1xi32, #tpu.memory_space<smem>>) -> (i32, i32) {
    %c0_i32 = arith.constant 0 : i32
    %c0_i32_0 = arith.constant 0 : i32
    %c0_i32_1 = arith.constant 0 : i32
    return %c0_i32, %c0_i32_0 : i32, i32
  }
  func.func @transform_6(%arg0: i32, %arg1: i32, %arg2: memref<1xi32, #tpu.memory_space<smem>>) -> (i32, i32) {
    %c0_i32 = arith.constant 0 : i32
    %c0_i32_0 = arith.constant 0 : i32
    %c0_i32_1 = arith.constant 0 : i32
    return %c0_i32, %c0_i32_0 : i32, i32
  }
  func.func @transform_7(%arg0: i32, %arg1: i32, %arg2: memref<1xi32, #tpu.memory_space<smem>>) -> (i32, i32) {
    %c0_i32 = arith.constant 0 : i32
    %c0_i32_0 = arith.constant 0 : i32
    %c0_i32_1 = arith.constant 0 : i32
    return %c0_i32, %c0_i32_0 : i32, i32
  }
  func.func @transform_8(%arg0: i32, %arg1: i32, %arg2: memref<1xi32, #tpu.memory_space<smem>>) -> (i32, i32) {
    %c0_i32 = arith.constant 0 : i32
    %c0_i32_0 = arith.constant 0 : i32
    %c0_i32_1 = arith.constant 0 : i32
    return %c0_i32, %c0_i32_0 : i32, i32
  }
  func.func @transform_9(%arg0: i32, %arg1: i32, %arg2: memref<1xi32, #tpu.memory_space<smem>>) -> (i32, i32) {
    %c0_i32 = arith.constant 0 : i32
    %c0_i32_0 = arith.constant 0 : i32
    return %arg0, %c0_i32 : i32, i32
  }
}

</mosaic_0001>

<llo_original>
// kernel: tpu_custom_call.1
$region0: #{tpu_custom_call.1}
  #allocation0 [shape = 'u32[]', space=smem, size = 0x4, offset = 0x4, fixed_abs, tag = 'smem constant byte address 0x4 - core index']
  #allocation1 [shape = 'u32[72,128]{1,0:T(1,128)}', space=vmem, size = 0x9000, scoped, tag = 'internal scratch']
  #allocation2 [shape = 'f32[2,32]{1,0:T(2,128)}', space=vmem, size = 0x400, scoped, tag = 'scratch operand']
  #allocation3 [shape = 's32[1]{0}', space=sflag, size = 0x4, scoped, tag = 'scoped memory for tpu_custom_call.1']
  #allocation4 [shape = 's32[1]{0:T(128)S(6)}', space=smem, size = 0x200, scoped, tag = 'prefetched SMEM operand 0']
  %s0 = inlined_call_operand.<no memory space> [shape: s32[1], index: 0, kind: input, shape index: {}]
  %s1 = inlined_call_operand.vmem [shape: s32[2,1], index: 1, kind: input, shape index: {}]
  %s2 = inlined_call_operand.vmem [shape: f32[2,200,32], index: 2, kind: input, shape index: {}]
  %s3 = inlined_call_operand.vmem [shape: f32[2,32], index: 3, kind: input, shape index: {}]
  %s4 = inlined_call_operand.vmem [shape: f32[32,64], index: 4, kind: input, shape index: {}]
  %s5 = inlined_call_operand.vmem [shape: f32[1,64], index: 5, kind: input, shape index: {}]
  %s6 = inlined_call_operand.vmem [shape: f32[64,64], index: 6, kind: input, shape index: {}]
  %s7 = inlined_call_operand.vmem [shape: f32[1,64], index: 7, kind: input, shape index: {}]
  %s8 = inlined_call_operand.vmem [shape: f32[64,128], index: 8, kind: input, shape index: {}]
  %s9 = inlined_call_operand.vmem [shape: f32[1,128], index: 9, kind: input, shape index: {}]
  %s10 = inlined_call_operand.hbm [shape: f32[2,128], index: 10, kind: output, shape index: {}]
  %s11 = sld [smem:[#allocation0]]
  $region133: #{tpu_custom_call.1} parent=0
    _
  %s13 = ssub.s32 1, %s11
  %s14 = scalar_select 0, %s13, %s11
  %15 = sst [smem:[#allocation4]] %s0
  $region1: #{tpu_custom_call.1} parent=0
    #allocation5 [shape = 'u8[131072]{0}', space=vmem, size = 0x20000, scoped, tag = 'input window, operand 2']
    #allocation6 [shape = 'u8[1024]{0}', space=vmem, size = 0x400, scoped, tag = 'output window, operand 0, single buffered']
    #allocation7 [shape = 's32[2]{0}', space=sflag, size = 0x8, scoped, tag = 'scoped memory for tpu_custom_call.1']
    %16 = vsyncpa [#allocation7], 0
    loop: start=0, step=1, limit=6
    $region2: #{tpu_custom_call.1} parent=1 // loop_pre_header
      _
    $region3: #{tpu_custom_call.1} parent=1 // loop_header
      %s18 = sphi 0, %s22
      %p19 = scmp.ge.s32.totalorder %s18, 6
      %s25 = sphi 0, %s37
      %s26 = sphi 0, %s33
      %s27 = sphi 0, %s25
      %s28 = sphi 0, %s26
      %s29 = sphi 0, %s27
      %s30 = sphi 0, %s28
      %s40 = sphi 0, %s42
      %s43 = sphi 0, %s40
      %s44 = sphi 0, %s43
      %s60 = sphi 0, %s44
      %s80 = sphi 0, %s82
      %s83 = sphi 0, %s80
      %s84 = sphi 0, %s83
      %s100 = sphi 0, %s84
      %s106 = sphi 0, %s108
      %s109 = sphi 0, %s106
      %s110 = sphi 0, %s109
      %s126 = sphi 0, %s110
      %s130 = sphi 0, %s130
      %s132 = sphi 0, %s130
      %s133 = sphi 0, %s132
      %s147 = sphi 0, %s133
      %s151 = sphi 0, %s151
      %s153 = sphi 0, %s151
      %s154 = sphi 0, %s153
      %s168 = sphi 0, %s154
      %s172 = sphi 0, %s172
      %s174 = sphi 0, %s172
      %s175 = sphi 0, %s174
      %s189 = sphi 0, %s175
      %s193 = sphi 0, %s193
      %s195 = sphi 0, %s193
      %s196 = sphi 0, %s195
      %s210 = sphi 0, %s196
      %s214 = sphi 0, %s214
      %s216 = sphi 0, %s214
      %s217 = sphi 0, %s216
      %s231 = sphi 0, %s217
      %s235 = sphi 0, %s235
      %s237 = sphi 0, %s235
      %s238 = sphi 0, %s237
      %s252 = sphi 0, %s238
      %s258 = sphi 0, %s260
      %s261 = sphi 0, %s258
      %s262 = sphi 0, %s261
      %s278 = sphi 0, %s262
    $region4: #{tpu_custom_call.1} parent=1 // loop_header_branch
      %21 = sbr.rel (%p19) target = $region8
    $region5: #{tpu_custom_call.1} parent=1 // loop_body
      %s23 = ssub.s32 %s18, 1
      %s24 = ssub.s32 %s18, 2
      %s31 = sadd.s32 1, %s26
      %p32 = scmp.ge.s32.totalorder %s31, 4
      %s33 = scalar_select %p32, 0, %s31
      %s34 = sadd.s32 1, %s25
      %s35 = scalar_select %p32, %s34, %s25
      %p36 = scmp.ge.s32.totalorder %s35, 1
      %s37 = scalar_select %p36, 0, %s35
      %s38 = ssub.s32 %s25, %s37
      %p39 = scmp.eq.s32.totalorder %s38, 0
      %s41 = sadd.s32 %s40, 1
      %s42 = scalar_select %p39, %s40, %s41
      %p45 = pneg %p39
      %p46 = scmp.eq.s32.totalorder %s18, 3
      %p47 = por %p45, %p46
      %p48 = scmp.ne.s32.totalorder %s40, %s43
      %p49 = scmp.eq.s32.totalorder %s18, 0
      %p50 = por %p48, %p49
      %p51 = scmp.ne.s32.totalorder %s40, %s43
      %p52 = scmp.eq.s32.totalorder %s23, 3
      %p53 = por %p51, %p52
      %p54 = scmp.ne.s32.totalorder %s43, %s44
      %p55 = scmp.eq.s32.totalorder %s23, 0
      %p56 = por %p54, %p55
      %p57 = scmp.ne.s32.totalorder %s43, %s44
      %p58 = scmp.eq.s32.totalorder %s24, 3
      %p59 = por %p57, %p58
      %p61 = scmp.ne.s32.totalorder %s44, %s60
      %p62 = scmp.eq.s32.totalorder %s24, 0
      %p63 = por %p61, %p62
      %s64 = sld [smem:[#allocation4]]
      %p65 = scmp.gt.s32.totalorder %s64, 1
      %s66 = scalar_select %p65, %s64, 1
      %s67 = ssub.s32 %s66, 1
      %p68 = scmp.lt.s32.totalorder %s26, %s67
      %s69 = scalar_select %p68, %s26, %s67
      %s70 = sld [smem:[#allocation4]]
      %p71 = scmp.gt.s32.totalorder %s70, 1
      %s72 = scalar_select %p71, %s70, 1
      %s73 = ssub.s32 %s72, 1
      %p74 = scmp.lt.s32.totalorder %s33, %s73
      %s75 = scalar_select %p74, %s33, %s73
      %s76 = ssub.s32 %s25, %s37
      %s77 = ssub.s32 %s69, %s75
      %s78 = sor.u32 %s76, %s77
      %p79 = scmp.eq.s32.totalorder %s78, 0
      %s81 = sadd.s32 %s80, 1
      %s82 = scalar_select %p79, %s80, %s81
      %p85 = pneg %p79
      %p86 = scmp.eq.s32.totalorder %s18, 3
      %p87 = por %p85, %p86
      %p88 = scmp.ne.s32.totalorder %s80, %s83
      %p89 = scmp.eq.s32.totalorder %s18, 0
      %p90 = por %p88, %p89
      %p91 = scmp.ne.s32.totalorder %s80, %s83
      %p92 = scmp.eq.s32.totalorder %s23, 3
      %p93 = por %p91, %p92
      %p94 = scmp.ne.s32.totalorder %s83, %s84
      %p95 = scmp.eq.s32.totalorder %s23, 0
      %p96 = por %p94, %p95
      %p97 = scmp.ne.s32.totalorder %s83, %s84
      %p98 = scmp.eq.s32.totalorder %s24, 3
      %p99 = por %p97, %p98
      %p101 = scmp.ne.s32.totalorder %s84, %s100
      %p102 = scmp.eq.s32.totalorder %s24, 0
      %p103 = por %p101, %p102
      %s104 = ssub.s32 %s25, %s37
      %p105 = scmp.eq.s32.totalorder %s104, 0
      %s107 = sadd.s32 %s106, 1
      %s108 = scalar_select %p105, %s106, %s107
      %p111 = pneg %p105
      %p112 = scmp.eq.s32.totalorder %s18, 3
      %p113 = por %p111, %p112
      %p114 = scmp.ne.s32.totalorder %s106, %s109
      %p115 = scmp.eq.s32.totalorder %s18, 0
      %p116 = por %p114, %p115
      %p117 = scmp.ne.s32.totalorder %s106, %s109
      %p118 = scmp.eq.s32.totalorder %s23, 3
      %p119 = por %p117, %p118
      %p120 = scmp.ne.s32.totalorder %s109, %s110
      %p121 = scmp.eq.s32.totalorder %s23, 0
      %p122 = por %p120, %p121
      %p123 = scmp.ne.s32.totalorder %s109, %s110
      %p124 = scmp.eq.s32.totalorder %s24, 3
      %p125 = por %p123, %p124
      %p127 = scmp.ne.s32.totalorder %s110, %s126
      %p128 = scmp.eq.s32.totalorder %s24, 0
      %p129 = por %p127, %p128
      %s131 = sadd.s32 %s130, 1
      %p134 = scmp.eq.s32.totalorder %s18, 3
      %p135 = scmp.ne.s32.totalorder %s130, %s132
      %p136 = scmp.eq.s32.totalorder %s18, 0
      %p137 = por %p135, %p136
      %p138 = scmp.ne.s32.totalorder %s130, %s132
      %p139 = scmp.eq.s32.totalorder %s23, 3
      %p140 = por %p138, %p139
      %p141 = scmp.ne.s32.totalorder %s132, %s133
      %p142 = scmp.eq.s32.totalorder %s23, 0
      %p143 = por %p141, %p142
      %p144 = scmp.ne.s32.totalorder %s132, %s133
      %p145 = scmp.eq.s32.totalorder %s24, 3
      %p146 = por %p144, %p145
      %p148 = scmp.ne.s32.totalorder %s133, %s147
      %p149 = scmp.eq.s32.totalorder %s24, 0
      %p150 = por %p148, %p149
      %s152 = sadd.s32 %s151, 1
      %p155 = scmp.eq.s32.totalorder %s18, 3
      %p156 = scmp.ne.s32.totalorder %s151, %s153
      %p157 = scmp.eq.s32.totalorder %s18, 0
      %p158 = por %p156, %p157
      %p159 = scmp.ne.s32.totalorder %s151, %s153
      %p160 = scmp.eq.s32.totalorder %s23, 3
      %p161 = por %p159, %p160
      %p162 = scmp.ne.s32.totalorder %s153, %s154
      %p163 = scmp.eq.s32.totalorder %s23, 0
      %p164 = por %p162, %p163
      %p165 = scmp.ne.s32.totalorder %s153, %s154
      %p166 = scmp.eq.s32.totalorder %s24, 3
      %p167 = por %p165, %p166
      %p169 = scmp.ne.s32.totalorder %s154, %s168
      %p170 = scmp.eq.s32.totalorder %s24, 0
      %p171 = por %p169, %p170
      %s173 = sadd.s32 %s172, 1
      %p176 = scmp.eq.s32.totalorder %s18, 3
      %p177 = scmp.ne.s32.totalorder %s172, %s174
      %p178 = scmp.eq.s32.totalorder %s18, 0
      %p179 = por %p177, %p178
      %p180 = scmp.ne.s32.totalorder %s172, %s174
      %p181 = scmp.eq.s32.totalorder %s23, 3
      %p182 = por %p180, %p181
      %p183 = scmp.ne.s32.totalorder %s174, %s175
      %p184 = scmp.eq.s32.totalorder %s23, 0
      %p185 = por %p183, %p184
      %p186 = scmp.ne.s32.totalorder %s174, %s175
      %p187 = scmp.eq.s32.totalorder %s24, 3
      %p188 = por %p186, %p187
      %p190 = scmp.ne.s32.totalorder %s175, %s189
      %p191 = scmp.eq.s32.totalorder %s24, 0
      %p192 = por %p190, %p191
      %s194 = sadd.s32 %s193, 1
      %p197 = scmp.eq.s32.totalorder %s18, 3
      %p198 = scmp.ne.s32.totalorder %s193, %s195
      %p199 = scmp.eq.s32.totalorder %s18, 0
      %p200 = por %p198, %p199
      %p201 = scmp.ne.s32.totalorder %s193, %s195
      %p202 = scmp.eq.s32.totalorder %s23, 3
      %p203 = por %p201, %p202
      %p204 = scmp.ne.s32.totalorder %s195, %s196
      %p205 = scmp.eq.s32.totalorder %s23, 0
      %p206 = por %p204, %p205
      %p207 = scmp.ne.s32.totalorder %s195, %s196
      %p208 = scmp.eq.s32.totalorder %s24, 3
      %p209 = por %p207, %p208
      %p211 = scmp.ne.s32.totalorder %s196, %s210
      %p212 = scmp.eq.s32.totalorder %s24, 0
      %p213 = por %p211, %p212
      %s215 = sadd.s32 %s214, 1
      %p218 = scmp.eq.s32.totalorder %s18, 3
      %p219 = scmp.ne.s32.totalorder %s214, %s216
      %p220 = scmp.eq.s32.totalorder %s18, 0
      %p221 = por %p219, %p220
      %p222 = scmp.ne.s32.totalorder %s214, %s216
      %p223 = scmp.eq.s32.totalorder %s23, 3
      %p224 = por %p222, %p223
      %p225 = scmp.ne.s32.totalorder %s216, %s217
      %p226 = scmp.eq.s32.totalorder %s23, 0
      %p227 = por %p225, %p226
      %p228 = scmp.ne.s32.totalorder %s216, %s217
      %p229 = scmp.eq.s32.totalorder %s24, 3
      %p230 = por %p228, %p229
      %p232 = scmp.ne.s32.totalorder %s217, %s231
      %p233 = scmp.eq.s32.totalorder %s24, 0
      %p234 = por %p232, %p233
      %s236 = sadd.s32 %s235, 1
      %p239 = scmp.eq.s32.totalorder %s18, 3
      %p240 = scmp.ne.s32.totalorder %s235, %s237
      %p241 = scmp.eq.s32.totalorder %s18, 0
      %p242 = por %p240, %p241
      %p243 = scmp.ne.s32.totalorder %s235, %s237
      %p244 = scmp.eq.s32.totalorder %s23, 3
      %p245 = por %p243, %p244
      %p246 = scmp.ne.s32.totalorder %s237, %s238
      %p247 = scmp.eq.s32.totalorder %s23, 0
      %p248 = por %p246, %p247
      %p249 = scmp.ne.s32.totalorder %s237, %s238
      %p250 = scmp.eq.s32.totalorder %s24, 3
      %p251 = por %p249, %p250
      %p253 = scmp.ne.s32.totalorder %s238, %s252
      %p254 = scmp.eq.s32.totalorder %s24, 0
      %p255 = por %p253, %p254
      %s256 = ssub.s32 %s25, %s37
      %p257 = scmp.eq.s32.totalorder %s256, 0
      %s259 = sadd.s32 %s258, 1
      %s260 = scalar_select %p257, %s258, %s259
      %p263 = pneg %p257
      %p264 = scmp.eq.s32.totalorder %s18, 3
      %p265 = por %p263, %p264
      %p266 = scmp.ne.s32.totalorder %s258, %s261
      %p267 = scmp.eq.s32.totalorder %s18, 0
      %p268 = por %p266, %p267
      %p269 = scmp.ne.s32.totalorder %s258, %s261
      %p270 = scmp.eq.s32.totalorder %s23, 3
      %p271 = por %p269, %p270
      %p272 = scmp.ne.s32.totalorder %s261, %s262
      %p273 = scmp.eq.s32.totalorder %s23, 0
      %p274 = por %p272, %p273
      %p275 = scmp.ne.s32.totalorder %s261, %s262
      %p276 = scmp.eq.s32.totalorder %s24, 3
      %p277 = por %p275, %p276
      %p279 = scmp.ne.s32.totalorder %s262, %s278
      %p280 = scmp.eq.s32.totalorder %s24, 0
      %p281 = por %p279, %p280
      %p282 = scmp.le.s32.totalorder 1, %s18
      %p283 = scmp.lt.s32.totalorder %s18, 5
      %p284 = pnand %p282, %p283
      %p285 = pneg %p284
      // Predicated region
      $region9: #{tpu_custom_call.1} parent=5 // pred_check
        _
      $region10: #{tpu_custom_call.1} parent=5 // pred_check_branch
        %287 = sbr.rel (%p284) target = $region12
      $region11: #{tpu_custom_call.1} parent=5 // pred_region
        %s288 = ssub.s32 %s18, 1
        // Predicated region
        $region13: #{tpu_custom_call.1} parent=11 // pred_check
          %p289 = pneg %p56
        $region14: #{tpu_custom_call.1} parent=11 // pred_check_branch
          %291 = sbr.rel (%p289) target = $region16
        $region15: #{tpu_custom_call.1} parent=11 // pred_region
          %p292 = scmp.lt.s32.totalorder %s27, 0
          %s293 = scalar_select %p292, %s27, 0
          %s294 = smul.addr %s293, 2
          %s295 = scalar_lea.vmem %s1, %s294
        $region16: #{tpu_custom_call.1} parent=11 // pred_fallthru
          _
        // Predicated region
        $region17: #{tpu_custom_call.1} parent=11 // pred_check
          %p296 = pneg %p122
        $region18: #{tpu_custom_call.1} parent=11 // pred_check_branch
          %298 = sbr.rel (%p296) target = $region20
        $region19: #{tpu_custom_call.1} parent=11 // pred_region
          %p299 = scmp.lt.s32.totalorder %s27, 0
          %s300 = scalar_select %p299, %s27, 0
          %s301 = smul.addr %s300, 2
          %s302 = scalar_lea.vmem %s3, %s301
        $region20: #{tpu_custom_call.1} parent=11 // pred_fallthru
          _
        // Predicated region
        $region21: #{tpu_custom_call.1} parent=11 // pred_check
          %p303 = pneg %p143
        $region22: #{tpu_custom_call.1} parent=11 // pred_check_branch
          %305 = sbr.rel (%p303) target = $region24
        $region23: #{tpu_custom_call.1} parent=11 // pred_region
          _
        $region24: #{tpu_custom_call.1} parent=11 // pred_fallthru
          _
        // Predicated region
        $region25: #{tpu_custom_call.1} parent=11 // pred_check
          %p306 = pneg %p164
        $region26: #{tpu_custom_call.1} parent=11 // pred_check_branch
          %308 = sbr.rel (%p306) target = $region28
        $region27: #{tpu_custom_call.1} parent=11 // pred_region
          _
        $region28: #{tpu_custom_call.1} parent=11 // pred_fallthru
          _
        // Predicated region
        $region29: #{tpu_custom_call.1} parent=11 // pred_check
          %p309 = pneg %p185
        $region30: #{tpu_custom_call.1} parent=11 // pred_check_branch
          %311 = sbr.rel (%p309) target = $region32
        $region31: #{tpu_custom_call.1} parent=11 // pred_region
          _
        $region32: #{tpu_custom_call.1} parent=11 // pred_fallthru
          _
        // Predicated region
        $region33: #{tpu_custom_call.1} parent=11 // pred_check
          %p312 = pneg %p206
        $region34: #{tpu_custom_call.1} parent=11 // pred_check_branch
          %314 = sbr.rel (%p312) target = $region36
        $region35: #{tpu_custom_call.1} parent=11 // pred_region
          _
        $region36: #{tpu_custom_call.1} parent=11 // pred_fallthru
          _
        // Predicated region
        $region37: #{tpu_custom_call.1} parent=11 // pred_check
          %p315 = pneg %p227
        $region38: #{tpu_custom_call.1} parent=11 // pred_check_branch
          %317 = sbr.rel (%p315) target = $region40
        $region39: #{tpu_custom_call.1} parent=11 // pred_region
          _
        $region40: #{tpu_custom_call.1} parent=11 // pred_fallthru
          _
        // Predicated region
        $region41: #{tpu_custom_call.1} parent=11 // pred_check
          %p318 = pneg %p248
        $region42: #{tpu_custom_call.1} parent=11 // pred_check_branch
          %320 = sbr.rel (%p318) target = $region44
        $region43: #{tpu_custom_call.1} parent=11 // pred_region
          _
        $region44: #{tpu_custom_call.1} parent=11 // pred_fallthru
          _
      $region12: #{tpu_custom_call.1} parent=5 // pred_fallthru
        _
      %p321 = scmp.lt.s32.totalorder %s18, 4
      // Predicated region
      $region45: #{tpu_custom_call.1} parent=5 // pred_check
        %p322 = pneg %p321
      $region46: #{tpu_custom_call.1} parent=5 // pred_check_branch
        %324 = sbr.rel (%p322) target = $region48
      $region47: #{tpu_custom_call.1} parent=5 // pred_region
        // Predicated region
        $region49: #{tpu_custom_call.1} parent=47 // pred_check
          %p325 = pneg %p90
        $region50: #{tpu_custom_call.1} parent=47 // pred_check_branch
          %327 = sbr.rel (%p325) target = $region52
        $region51: #{tpu_custom_call.1} parent=47 // pred_region
          %s328 = sand.u32 %s80, 1
          %s329 = sand.u32 %s80, 1
          %s330 = smul.addr %s329, 128
          %s331 = scalar_lea.vmem [#allocation5], %s330
          %s332 = sld [smem:[#allocation4]]
          %p333 = scmp.gt.s32.totalorder %s332, 1
          %s334 = scalar_select %p333, %s332, 1
          %s335 = ssub.s32 %s334, 1
          %p336 = scmp.lt.s32.totalorder %s26, %s335
          %s337 = scalar_select %p336, %s26, %s335
          %s338 = smul.u32 2, %s25
          %s339 = smul.u32 8, %s337
          %s340 = ssub.s32 25, %s339
          %p341 = scmp.lt.s32.totalorder %s340, 8
          %s342 = scalar_select %p341, %s340, 8
          %s343 = smul.u32 16, %s342
          %p344 = scmp.ne.s32.totalorder 0, %s343
          %s345 = smul.addr %s338, 25
          %s346 = sadd.s32 %s339, %s345
          %s347 = smul.addr %s346, 8
          %s348 = scalar_lea.vmem %s2, %s347
          // Predicated region
          $region53: #{tpu_custom_call.1} parent=51 // pred_check
            %p349 = pneg %p344
          $region54: #{tpu_custom_call.1} parent=51 // pred_check_branch
            %351 = sbr.rel (%p349) target = $region56
          $region55: #{tpu_custom_call.1} parent=51 // pred_region
            // Predicated region
            $region57: #{tpu_custom_call.1} parent=55 // pred_check
              _
            $region58: #{tpu_custom_call.1} parent=55 // pred_check_branch
              %353 = sbr.rel (0) target = $region60
            $region59: #{tpu_custom_call.1} parent=55 // pred_region
              // Predicated region
              $region79: #{tpu_custom_call.1} parent=59 // pred_check
                _
              $region80: #{tpu_custom_call.1} parent=59 // pred_check_branch
                %435 = sbr.rel (0) target = $region82
              $region81: #{tpu_custom_call.1} parent=59 // pred_region
                %s436 = sshrl.u32 %s342, 3
                // While loop
                $region83: #{tpu_custom_call.1} parent=81 // loop_pre_header
                  _
                $region84: #{tpu_custom_call.1} parent=81 // loop_header
                  %s438 = sphi 0, %s440
                  %p439 = scmp.ge.s32.totalorder %s438, %s436
                  %s443 = sphi 0, %s480
                  %s444 = sphi %s348, %s483
                  %s445 = sphi %s331, %s484
                $region85: #{tpu_custom_call.1} parent=81 // loop_header_branch
                  %442 = sbr.rel (%p439) target = $region89
                $region86: #{tpu_custom_call.1} parent=81 // loop_body
                  %v446 = vld [vmem:[%s444] sm:$0xff]
                  %447 = vst [vmem:[%s445] sm:$0xff] %v446
                  %v448 = vld [vmem:[%s444 + $0x8] sm:$0xff]
                  %449 = vst [vmem:[%s445 + $0x8] sm:$0xff] %v448
                  %v450 = vld [vmem:[%s444 + $0x10] sm:$0xff]
                  %451 = vst [vmem:[%s445 + $0x10] sm:$0xff] %v450
                  %v452 = vld [vmem:[%s444 + $0x18] sm:$0xff]
                  %453 = vst [vmem:[%s445 + $0x18] sm:$0xff] %v452
                  %v454 = vld [vmem:[%s444 + $0x20] sm:$0xff]
                  %455 = vst [vmem:[%s445 + $0x20] sm:$0xff] %v454
                  %v456 = vld [vmem:[%s444 + $0x28] sm:$0xff]
                  %457 = vst [vmem:[%s445 + $0x28] sm:$0xff] %v456
                  %v458 = vld [vmem:[%s444 + $0x30] sm:$0xff]
                  %459 = vst [vmem:[%s445 + $0x30] sm:$0xff] %v458
                  %v460 = vld [vmem:[%s444 + $0x38] sm:$0xff]
                  %461 = vst [vmem:[%s445 + $0x38] sm:$0xff] %v460
                  %v462 = vld [vmem:[%s444 + $0xc8] sm:$0xff]
                  %463 = vst [vmem:[%s445 + $0x40] sm:$0xff] %v462
                  %v464 = vld [vmem:[%s444 + $0xd0] sm:$0xff]
                  %465 = vst [vmem:[%s445 + $0x48] sm:$0xff] %v464
                  %v466 = vld [vmem:[%s444 + $0xd8] sm:$0xff]
                  %467 = vst [vmem:[%s445 + $0x50] sm:$0xff] %v466
                  %v468 = vld [vmem:[%s444 + $0xe0] sm:$0xff]
                  %469 = vst [vmem:[%s445 + $0x58] sm:$0xff] %v468
                  %v470 = vld [vmem:[%s444 + $0xe8] sm:$0xff]
                  %471 = vst [vmem:[%s445 + $0x60] sm:$0xff] %v470
                  %v472 = vld [vmem:[%s444 + $0xf0] sm:$0xff]
                  %473 = vst [vmem:[%s445 + $0x68] sm:$0xff] %v472
                  %v474 = vld [vmem:[%s444 + $0xf8] sm:$0xff]
                  %475 = vst [vmem:[%s445 + $0x70] sm:$0xff] %v474
                  %v476 = vld [vmem:[%s444 + $0x100] sm:$0xff]
                  %477 = vst [vmem:[%s445 + $0x78] sm:$0xff] %v476
                  %s478 = sadd.s32 1, %s443
                  %p479 = scmp.ge.s32.totalorder %s478, %s436
                  %s480 = scalar_select %p479, 0, %s478
                  %s481 = smul.u32 %s480, 64
                  %s482 = smul.u32 %s480, 64
                  %s483 = scalar_lea.vmem %s348, %s481
                  %s484 = scalar_lea.vmem %s331, %s482 [#allocation5]
                $region87: #{tpu_custom_call.1} parent=81 // loop_footer
                  %s440 = sadd.s32 %s438, 1
                $region88: #{tpu_custom_call.1} parent=81 // loop_footer_branch
                  %437 = sbr.rel target = $region84
                $region89: #{tpu_custom_call.1} parent=81 // loop_exit
                  _
                %s485 = sshrl.u32 %s342, 3
                %s486 = sand.u32 %s342, 7
                %s487 = smul.u32 %s485, 8
                %s488 = smul.u32 8, %s487
                %s489 = scalar_lea.vmem %s348, %s488
                %s490 = smul.u32 8, %s487
                %s491 = scalar_lea.vmem %s331, %s490 [#allocation5]
                // While loop
                $region90: #{tpu_custom_call.1} parent=81 // loop_pre_header
                  _
                $region91: #{tpu_custom_call.1} parent=81 // loop_header
                  %s493 = sphi 0, %s495
                  %p494 = scmp.ge.s32.totalorder %s493, %s486
                  %s498 = sphi 0, %s507
                  %s499 = sphi %s489, %s510
                  %s500 = sphi %s491, %s511
                $region92: #{tpu_custom_call.1} parent=81 // loop_header_branch
                  %497 = sbr.rel (%p494) target = $region96
                $region93: #{tpu_custom_call.1} parent=81 // loop_body
                  %v501 = vld [vmem:[%s499] sm:$0xff]
                  %502 = vst [vmem:[%s500] sm:$0xff] %v501
                  %v503 = vld [vmem:[%s499 + $0xc8] sm:$0xff]
                  %504 = vst [vmem:[%s500 + $0x40] sm:$0xff] %v503
                  %s505 = sadd.s32 1, %s498
                  %p506 = scmp.ge.s32.totalorder %s505, %s486
                  %s507 = scalar_select %p506, 0, %s505
                  %s508 = smul.u32 %s507, 8
                  %s509 = smul.u32 %s507, 8
                  %s510 = scalar_lea.vmem %s489, %s508
                  %s511 = scalar_lea.vmem %s491, %s509 [#allocation5]
                $region94: #{tpu_custom_call.1} parent=81 // loop_footer
                  %s495 = sadd.s32 %s493, 1
                $region95: #{tpu_custom_call.1} parent=81 // loop_footer_branch
                  %492 = sbr.rel target = $region91
                $region96: #{tpu_custom_call.1} parent=81 // loop_exit
                  _
              $region82: #{tpu_custom_call.1} parent=59 // pred_fallthru
                _
              // Predicated region
              $region97: #{tpu_custom_call.1} parent=59 // pred_check
                _
              $region98: #{tpu_custom_call.1} parent=59 // pred_check_branch
                %513 = sbr.rel target = $region100
              $region99: #{tpu_custom_call.1} parent=59 // pred_region
                _
              $region100: #{tpu_custom_call.1} parent=59 // pred_fallthru
                _
            $region60: #{tpu_custom_call.1} parent=55 // pred_fallthru
              _
            // Predicated region
            $region61: #{tpu_custom_call.1} parent=55 // pred_check
              _
            $region62: #{tpu_custom_call.1} parent=55 // pred_check_branch
              %355 = sbr.rel target = $region64
            $region63: #{tpu_custom_call.1} parent=55 // pred_region
              %s357 = ssub.s32 256, 1
              %s358 = sshrl.u32 %s342, 3
              // While loop
              $region65: #{tpu_custom_call.1} parent=63 // loop_pre_header
                _
              $region66: #{tpu_custom_call.1} parent=63 // loop_header
                %s360 = sphi 0, %s362
                %p361 = scmp.ge.s32.totalorder %s360, %s358
                %s365 = sphi 0, %s402
                %s366 = sphi %s348, %s405
                %s367 = sphi %s331, %s406
              $region67: #{tpu_custom_call.1} parent=63 // loop_header_branch
                %364 = sbr.rel (%p361) target = $region71
              $region68: #{tpu_custom_call.1} parent=63 // loop_body
                %v368 = vld [vmem:[%s366] sm:%s357]
                %369 = vst [vmem:[%s367] sm:%s357] %v368
                %v370 = vld [vmem:[%s366 + $0x8] sm:%s357]
                %371 = vst [vmem:[%s367 + $0x8] sm:%s357] %v370
                %v372 = vld [vmem:[%s366 + $0x10] sm:%s357]
                %373 = vst [vmem:[%s367 + $0x10] sm:%s357] %v372
                %v374 = vld [vmem:[%s366 + $0x18] sm:%s357]
                %375 = vst [vmem:[%s367 + $0x18] sm:%s357] %v374
                %v376 = vld [vmem:[%s366 + $0x20] sm:%s357]
                %377 = vst [vmem:[%s367 + $0x20] sm:%s357] %v376
                %v378 = vld [vmem:[%s366 + $0x28] sm:%s357]
                %379 = vst [vmem:[%s367 + $0x28] sm:%s357] %v378
                %v380 = vld [vmem:[%s366 + $0x30] sm:%s357]
                %381 = vst [vmem:[%s367 + $0x30] sm:%s357] %v380
                %v382 = vld [vmem:[%s366 + $0x38] sm:%s357]
                %383 = vst [vmem:[%s367 + $0x38] sm:%s357] %v382
                %v384 = vld [vmem:[%s366 + $0xc8] sm:%s357]
                %385 = vst [vmem:[%s367 + $0x40] sm:%s357] %v384
                %v386 = vld [vmem:[%s366 + $0xd0] sm:%s357]
                %387 = vst [vmem:[%s367 + $0x48] sm:%s357] %v386
                %v388 = vld [vmem:[%s366 + $0xd8] sm:%s357]
                %389 = vst [vmem:[%s367 + $0x50] sm:%s357] %v388
                %v390 = vld [vmem:[%s366 + $0xe0] sm:%s357]
                %391 = vst [vmem:[%s367 + $0x58] sm:%s357] %v390
                %v392 = vld [vmem:[%s366 + $0xe8] sm:%s357]
                %393 = vst [vmem:[%s367 + $0x60] sm:%s357] %v392
                %v394 = vld [vmem:[%s366 + $0xf0] sm:%s357]
                %395 = vst [vmem:[%s367 + $0x68] sm:%s357] %v394
                %v396 = vld [vmem:[%s366 + $0xf8] sm:%s357]
                %397 = vst [vmem:[%s367 + $0x70] sm:%s357] %v396
                %v398 = vld [vmem:[%s366 + $0x100] sm:%s357]
                %399 = vst [vmem:[%s367 + $0x78] sm:%s357] %v398
                %s400 = sadd.s32 1, %s365
                %p401 = scmp.ge.s32.totalorder %s400, %s358
                %s402 = scalar_select %p401, 0, %s400
                %s403 = smul.u32 %s402, 64
                %s404 = smul.u32 %s402, 64
                %s405 = scalar_lea.vmem %s348, %s403
                %s406 = scalar_lea.vmem %s331, %s404 [#allocation5]
              $region69: #{tpu_custom_call.1} parent=63 // loop_footer
                %s362 = sadd.s32 %s360, 1
              $region70: #{tpu_custom_call.1} parent=63 // loop_footer_branch
                %359 = sbr.rel target = $region66
              $region71: #{tpu_custom_call.1} parent=63 // loop_exit
                _
              %s407 = sshrl.u32 %s342, 3
              %s408 = sand.u32 %s342, 7
              %s409 = smul.u32 %s407, 8
              %s410 = smul.u32 8, %s409
              %s411 = scalar_lea.vmem %s348, %s410
              %s412 = smul.u32 8, %s409
              %s413 = scalar_lea.vmem %s331, %s412 [#allocation5]
              // While loop
              $region72: #{tpu_custom_call.1} parent=63 // loop_pre_header
                _
              $region73: #{tpu_custom_call.1} parent=63 // loop_header
                %s415 = sphi 0, %s417
                %p416 = scmp.ge.s32.totalorder %s415, %s408
                %s420 = sphi 0, %s429
                %s421 = sphi %s411, %s432
                %s422 = sphi %s413, %s433
              $region74: #{tpu_custom_call.1} parent=63 // loop_header_branch
                %419 = sbr.rel (%p416) target = $region78
              $region75: #{tpu_custom_call.1} parent=63 // loop_body
                %v423 = vld [vmem:[%s421] sm:%s357]
                %424 = vst [vmem:[%s422] sm:%s357] %v423
                %v425 = vld [vmem:[%s421 + $0xc8] sm:%s357]
                %426 = vst [vmem:[%s422 + $0x40] sm:%s357] %v425
                %s427 = sadd.s32 1, %s420
                %p428 = scmp.ge.s32.totalorder %s427, %s408
                %s429 = scalar_select %p428, 0, %s427
                %s430 = smul.u32 %s429, 8
                %s431 = smul.u32 %s429, 8
                %s432 = scalar_lea.vmem %s411, %s430
                %s433 = scalar_lea.vmem %s413, %s431 [#allocation5]
              $region76: #{tpu_custom_call.1} parent=63 // loop_footer
                %s417 = sadd.s32 %s415, 1
              $region77: #{tpu_custom_call.1} parent=63 // loop_footer_branch
                %414 = sbr.rel target = $region73
              $region78: #{tpu_custom_call.1} parent=63 // loop_exit
                _
            $region64: #{tpu_custom_call.1} parent=55 // pred_fallthru
              _
          $region56: #{tpu_custom_call.1} parent=51 // pred_fallthru
            _
          %514 = vnop
        $region52: #{tpu_custom_call.1} parent=47 // pred_fallthru
          _
      $region48: #{tpu_custom_call.1} parent=5 // pred_fallthru
        _
      %p515 = scmp.le.s32.totalorder 1, %s18
      %p516 = scmp.lt.s32.totalorder %s18, 5
      %p517 = pnand %p515, %p516
      %p518 = pneg %p517
      // Predicated region
      $region101: #{tpu_custom_call.1} parent=5 // pred_check
        _
      $region102: #{tpu_custom_call.1} parent=5 // pred_check_branch
        %520 = sbr.rel (%p517) target = $region104
      $region103: #{tpu_custom_call.1} parent=5 // pred_region
        %s521 = ssub.s32 %s18, 1
        %s522 = sand.u32 %s83, 1
        %s523 = sand.u32 %s83, 1
        %s524 = smul.addr %s523, 128
        %s525 = scalar_lea.vmem [#allocation5], %s524
        // Predicated region
        $region105: #{tpu_custom_call.1} parent=103 // pred_check
          %p526 = pneg %p96
        $region106: #{tpu_custom_call.1} parent=103 // pred_check_branch
          %528 = sbr.rel (%p526) target = $region108
        $region107: #{tpu_custom_call.1} parent=103 // pred_region
          _
        $region108: #{tpu_custom_call.1} parent=103 // pred_fallthru
          _
        %p529 = scmp.lt.s32.totalorder %s27, 0
        %s530 = scalar_select %p529, %s27, 0
        %s531 = smul.addr %s530, 2
        %s532 = scalar_lea.vmem %s1, %s531
        %p533 = pneg %p56
        %p534 = pneg %p53
        %s535 = sand.u32 %s83, 1
        %s536 = sand.u32 %s83, 1
        %s537 = smul.addr %s536, 128
        %s538 = scalar_lea.vmem [#allocation5], %s537
        %p539 = pneg %p96
        %p540 = pneg %p93
        %p541 = scmp.lt.s32.totalorder %s27, 0
        %s542 = scalar_select %p541, %s27, 0
        %s543 = smul.addr %s542, 2
        %s544 = scalar_lea.vmem %s3, %s543
        %p545 = pneg %p122
        %p546 = pneg %p119
        %p547 = pneg %p143
        %p548 = pneg %p140
        %p549 = pneg %p164
        %p550 = pneg %p161
        %p551 = pneg %p185
        %p552 = pneg %p182
        %p553 = pneg %p206
        %p554 = pneg %p203
        %p555 = pneg %p227
        %p556 = pneg %p224
        %p557 = pneg %p248
        %p558 = pneg %p245
        %p559 = pneg %p274
        %p560 = pneg %p271
        %p561 = scmp.lt.s32.totalorder %s27, 0
        %s562 = scalar_select %p561, %s27, 0
        %s563 = smul.addr %s562, 2
        %s564 = scalar_lea.vmem %s1, %s563
        %s565 = sld [smem:[#allocation4]]
        %p566 = scmp.gt.s32.totalorder %s565, 1
        %s567 = scalar_select %p566, %s565, 1
        %s568 = ssub.s32 %s567, 1
        %p569 = scmp.lt.s32.totalorder %s28, %s568
        %s570 = scalar_select %p569, %s28, %s568
        %s571 = smul.u32 2, %s27
        %s572 = smul.u32 8, %s570
        %s573 = ssub.s32 25, %s572
        %p574 = scmp.lt.s32.totalorder %s573, 8
        %s575 = scalar_select %p574, %s573, 8
        %s576 = smul.u32 16, %s575
        %p577 = scmp.lt.s32.totalorder %s27, 0
        %s578 = scalar_select %p577, %s27, 0
        %s579 = smul.addr %s578, 2
        %s580 = scalar_lea.vmem %s3, %s579
        %s581 = sld [smem:[#allocation4]]
        %p582 = scmp.eq.s32.totalorder %s28, 0
        // Predicated region
        $region109: #{tpu_custom_call.1} parent=103 // pred_check
          %p583 = pneg %p582
        $region110: #{tpu_custom_call.1} parent=103 // pred_check_branch
          %585 = sbr.rel (%p583) target = $region112
        $region111: #{tpu_custom_call.1} parent=103 // pred_region
          %vm586 = vcmask 254976
          %587 = vst.msk [vmem:[#allocation2] sm:$0x3] %vm586, 0.0
        $region112: #{tpu_custom_call.1} parent=103 // pred_fallthru
          _
        %p588 = scmp.lt.s32.totalorder %s28, %s581
        // Predicated region
        $region113: #{tpu_custom_call.1} parent=103 // pred_check
          %p589 = pneg %p588
        $region114: #{tpu_custom_call.1} parent=103 // pred_check_branch
          %591 = sbr.rel (%p589) target = $region116
        $region115: #{tpu_custom_call.1} parent=103 // pred_region
          %v592 = vld [vmem:[%s525] sm:$0xff]
          %v593 = vld [vmem:[%s525 + $0x8] sm:$0xff]
          %v594 = vld [vmem:[%s525 + $0x10] sm:$0xff]
          %v595 = vld [vmem:[%s525 + $0x18] sm:$0xff]
          %v596 = vld [vmem:[%s525 + $0x20] sm:$0xff]
          %v597 = vld [vmem:[%s525 + $0x28] sm:$0xff]
          %v598 = vld [vmem:[%s525 + $0x30] sm:$0xff]
          %v599 = vld [vmem:[%s525 + $0x38] sm:$0xff]
          %v600 = vld [vmem:[%s525 + $0x40] sm:$0xff]
          %v601 = vld [vmem:[%s525 + $0x48] sm:$0xff]
          %v602 = vld [vmem:[%s525 + $0x50] sm:$0xff]
          %v603 = vld [vmem:[%s525 + $0x58] sm:$0xff]
          %v604 = vld [vmem:[%s525 + $0x60] sm:$0xff]
          %v605 = vld [vmem:[%s525 + $0x68] sm:$0xff]
          %v606 = vld [vmem:[%s525 + $0x70] sm:$0xff]
          %v607 = vld [vmem:[%s525 + $0x78] sm:$0xff]
          %v608 = vld [vmem:[%s564] sm:$0x3]
          %v609 = vlaneseq
          %v610 = vshrl.u32 %v609, 7
          %v611 = vadd.s32 %v610, 8
          %v612 = vadd.s32 %v610, 16
          %v613 = vadd.s32 %v610, 24
          %v614 = vadd.s32 %v610, 32
          %v615 = vadd.s32 %v610, 40
          %v616 = vadd.s32 %v610, 48
          %v617 = vadd.s32 %v610, 56
          %s618 = smul.u32 %s28, 64
          %v619 = vstv %s618
          %v620 = vadd.s32 %v610, %v619
          %v621 = vadd.s32 %v611, %v619
          %v622 = vadd.s32 %v612, %v619
          %v623 = vadd.s32 %v613, %v619
          %v624 = vadd.s32 %v614, %v619
          %v625 = vadd.s32 %v615, %v619
          %v626 = vadd.s32 %v616, %v619
          %v627 = vadd.s32 %v617, %v619
          %v628 = vrot.slane %v608, 1
          %v629 = vperm.slane %v608, 0
          %v630 = vperm.slane %v628, 0
          %vm631 = vcmp.lt.s32.totalorder %v620, %v629
          %vm632 = vcmp.lt.s32.totalorder %v621, %v629
          %vm633 = vcmp.lt.s32.totalorder %v622, %v629
          %vm634 = vcmp.lt.s32.totalorder %v623, %v629
          %vm635 = vcmp.lt.s32.totalorder %v624, %v629
          %vm636 = vcmp.lt.s32.totalorder %v625, %v629
          %vm637 = vcmp.lt.s32.totalorder %v626, %v629
          %vm638 = vcmp.lt.s32.totalorder %v627, %v629
          %vm639 = vcmp.lt.s32.totalorder %v620, %v630
          %vm640 = vcmp.lt.s32.totalorder %v621, %v630
          %vm641 = vcmp.lt.s32.totalorder %v622, %v630
          %vm642 = vcmp.lt.s32.totalorder %v623, %v630
          %vm643 = vcmp.lt.s32.totalorder %v624, %v630
          %vm644 = vcmp.lt.s32.totalorder %v625, %v630
          %vm645 = vcmp.lt.s32.totalorder %v626, %v630
          %vm646 = vcmp.lt.s32.totalorder %v627, %v630
          %v647 = vld [vmem:[#allocation2] sm:$0x3]
          %v648 = vsel %vm631, 1, 0
          %v649 = vsel %vm632, 1, 0
          %v650 = vsel %vm633, 1, 0
          %v651 = vsel %vm634, 1, 0
          %v652 = vsel %vm635, 1, 0
          %v653 = vsel %vm636, 1, 0
          %v654 = vsel %vm637, 1, 0
          %v655 = vsel %vm638, 1, 0
          %v656 = vsel %vm639, 1, 0
          %v657 = vsel %vm640, 1, 0
          %v658 = vsel %vm641, 1, 0
          %v659 = vsel %vm642, 1, 0
          %v660 = vsel %vm643, 1, 0
          %v661 = vsel %vm644, 1, 0
          %v662 = vsel %vm645, 1, 0
          %v663 = vsel %vm646, 1, 0
          %664 = vset.pattern.permute.xlu0 0
          %665 = vperm.xlu0 %664, %v648
          %v666 = vpop.permute.xlu0 %665
          %667 = vset.pattern.permute.xlu0 0
          %668 = vperm.xlu0 %667, %v649
          %v669 = vpop.permute.xlu0 %668
          %670 = vset.pattern.permute.xlu0 0
          %671 = vperm.xlu0 %670, %v650
          %v672 = vpop.permute.xlu0 %671
          %673 = vset.pattern.permute.xlu0 0
          %674 = vperm.xlu0 %673, %v651
          %v675 = vpop.permute.xlu0 %674
          %676 = vset.pattern.permute.xlu0 0
          %677 = vperm.xlu0 %676, %v652
          %v678 = vpop.permute.xlu0 %677
          %679 = vset.pattern.permute.xlu0 0
          %680 = vperm.xlu0 %679, %v653
          %v681 = vpop.permute.xlu0 %680
          %682 = vset.pattern.permute.xlu0 0
          %683 = vperm.xlu0 %682, %v654
          %v684 = vpop.permute.xlu0 %683
          %685 = vset.pattern.permute.xlu0 0
          %686 = vperm.xlu0 %685, %v655
          %v687 = vpop.permute.xlu0 %686
          %688 = vset.pattern.permute.xlu0 0
          %689 = vperm.xlu0 %688, %v656
          %v690 = vpop.permute.xlu0 %689
          %691 = vset.pattern.permute.xlu0 0
          %692 = vperm.xlu0 %691, %v657
          %v693 = vpop.permute.xlu0 %692
          %694 = vset.pattern.permute.xlu0 0
          %695 = vperm.xlu0 %694, %v658
          %v696 = vpop.permute.xlu0 %695
          %697 = vset.pattern.permute.xlu0 0
          %698 = vperm.xlu0 %697, %v659
          %v699 = vpop.permute.xlu0 %698
          %700 = vset.pattern.permute.xlu0 0
          %701 = vperm.xlu0 %700, %v660
          %v702 = vpop.permute.xlu0 %701
          %703 = vset.pattern.permute.xlu0 0
          %704 = vperm.xlu0 %703, %v661
          %v705 = vpop.permute.xlu0 %704
          %706 = vset.pattern.permute.xlu0 0
          %707 = vperm.xlu0 %706, %v662
          %v708 = vpop.permute.xlu0 %707
          %709 = vset.pattern.permute.xlu0 0
          %710 = vperm.xlu0 %709, %v663
          %v711 = vpop.permute.xlu0 %710
          %vm712 = vcmp.eq.s32.totalorder %v666, 1
          %vm713 = vcmp.eq.s32.totalorder %v669, 1
          %vm714 = vcmp.eq.s32.totalorder %v672, 1
          %vm715 = vcmp.eq.s32.totalorder %v675, 1
          %vm716 = vcmp.eq.s32.totalorder %v678, 1
          %vm717 = vcmp.eq.s32.totalorder %v681, 1
          %vm718 = vcmp.eq.s32.totalorder %v684, 1
          %vm719 = vcmp.eq.s32.totalorder %v687, 1
          %vm720 = vcmp.eq.s32.totalorder %v690, 1
          %vm721 = vcmp.eq.s32.totalorder %v693, 1
          %vm722 = vcmp.eq.s32.totalorder %v696, 1
          %vm723 = vcmp.eq.s32.totalorder %v699, 1
          %vm724 = vcmp.eq.s32.totalorder %v702, 1
          %vm725 = vcmp.eq.s32.totalorder %v705, 1
          %vm726 = vcmp.eq.s32.totalorder %v708, 1
          %vm727 = vcmp.eq.s32.totalorder %v711, 1
          %v728 = vsel %vm712, %v592, 0.0
          %v729 = vsel %vm713, %v593, 0.0
          %v730 = vsel %vm714, %v594, 0.0
          %v731 = vsel %vm715, %v595, 0.0
          %v732 = vsel %vm716, %v596, 0.0
          %v733 = vsel %vm717, %v597, 0.0
          %v734 = vsel %vm718, %v598, 0.0
          %v735 = vsel %vm719, %v599, 0.0
          %v736 = vsel %vm720, %v600, 0.0
          %v737 = vsel %vm721, %v601, 0.0
          %v738 = vsel %vm722, %v602, 0.0
          %v739 = vsel %vm723, %v603, 0.0
          %v740 = vsel %vm724, %v604, 0.0
          %v741 = vsel %vm725, %v605, 0.0
          %v742 = vsel %vm726, %v606, 0.0
          %v743 = vsel %vm727, %v607, 0.0
          %vm744 = vcmask 261120
          %v745 = vsel %vm744, %v728, 0.0
          %v746 = vsel %vm744, %v729, 0.0
          %v747 = vadd.f32 %v745, %v746
          %v748 = vsel %vm744, %v730, 0.0
          %v749 = vadd.f32 %v747, %v748
          %v750 = vsel %vm744, %v731, 0.0
          %v751 = vadd.f32 %v749, %v750
          %v752 = vsel %vm744, %v732, 0.0
          %v753 = vadd.f32 %v751, %v752
          %v754 = vsel %vm744, %v733, 0.0
          %v755 = vadd.f32 %v753, %v754
          %v756 = vsel %vm744, %v734, 0.0
          %v757 = vadd.f32 %v755, %v756
          %v758 = vsel %vm744, %v735, 0.0
          %v759 = vadd.f32 %v757, %v758
          %v760 = vrot.slane %v759, 4
          %v761 = vadd.f32 %v759, %v760
          %v762 = vrot.slane %v761, 2
          %v763 = vadd.f32 %v761, %v762
          %v764 = vrot.slane %v763, 1
          %v765 = vadd.f32 %v763, %v764
          %v766 = vsel %vm744, %v736, 0.0
          %v767 = vsel %vm744, %v737, 0.0
          %v768 = vadd.f32 %v766, %v767
          %v769 = vsel %vm744, %v738, 0.0
          %v770 = vadd.f32 %v768, %v769
          %v771 = vsel %vm744, %v739, 0.0
          %v772 = vadd.f32 %v770, %v771
          %v773 = vsel %vm744, %v740, 0.0
          %v774 = vadd.f32 %v772, %v773
          %v775 = vsel %vm744, %v741, 0.0
          %v776 = vadd.f32 %v774, %v775
          %v777 = vsel %vm744, %v742, 0.0
          %v778 = vadd.f32 %v776, %v777
          %v779 = vsel %vm744, %v743, 0.0
          %v780 = vadd.f32 %v778, %v779
          %v781 = vrot.slane %v780, 4
          %v782 = vadd.f32 %v780, %v781
          %v783 = vrot.slane %v782, 2
          %v784 = vadd.f32 %v782, %v783
          %v785 = vrot.slane %v784, 1
          %v786 = vadd.f32 %v784, %v785
          %vm789 = vcmask 1041409
          %v790 = vsel %vm789, %v786, %v765
          %v792 = vadd.f32 %v647, %v790
          %vm793 = vcmask 254976
          %794 = vst.msk [vmem:[#allocation2] sm:$0x3] %vm793, %v792
        $region116: #{tpu_custom_call.1} parent=103 // pred_fallthru
          _
        %p795 = scmp.eq.s32.totalorder %s28, 3
        // Predicated region
        $region117: #{tpu_custom_call.1} parent=103 // pred_check
          %p796 = pneg %p795
        $region118: #{tpu_custom_call.1} parent=103 // pred_check_branch
          %798 = sbr.rel (%p796) target = $region120
        $region119: #{tpu_custom_call.1} parent=103 // pred_region
          %v799 = vld [vmem:[%s564] sm:$0x3]
          %vm800 = vcmp.gt.s32.totalorder %v799, 1
          %v801 = vsel %vm800, %v799, 1
          %v802 = vcvt.s32.f32 %v801
          %v803 = vrcp.pop %v802
          %v804 = vld [vmem:[#allocation2] sm:$0x3]
          %806 = vset.pattern.permute.xlu0 0
          %807 = vperm.xlu0 %806, %v803
          %v808 = vpop.permute.xlu0 %807
          %v810 = vmul.f32 %v804, %v808
          %v811 = vld [vmem:[%s580] sm:$0x3]
          %v812 = vadd.f32 %v810, %v811
          %v813 = vld [vmem:[%s4] sm:$0xff]
          %v814 = vld [vmem:[%s4 + $0x8] sm:$0xff]
          %v815 = vld [vmem:[%s4 + $0x10] sm:$0xff]
          %v816 = vld [vmem:[%s4 + $0x18] sm:$0xff]
          %v817 = vld [vmem:[%s5] sm:$0x1]
          %v819 = vperm.slane %v817, 0
          %vm821 = vcmask 261120
          %v823 = vsel %vm821, %v812, 0
          %825 = vmatpush.msra.mxu0 0.0
          %826 = vmatpush.msra.mxu0 0.0
          %827 = vmatpush.msra.mxu0 0.0
          %828 = vmatpush.msra.mxu0 0.0
          %829 = vmatpush.msra.mxu0 0.0
          %830 = vmatpush.msra.mxu0 0.0
          %831 = vmatpush.msra.mxu0 0.0
          %832 = vmatpush.msra.mxu0 0.0
          %833 = vmatpush.msra.mxu0 0.0
          %834 = vmatpush.msra.mxu0 0.0
          %835 = vmatpush.msra.mxu0 0.0
          %836 = vmatpush.msra.mxu0 0.0
          %837 = vmatpush.msra.mxu0 %v816
          %838 = vmatpush.msra.mxu0 %v815
          %839 = vmatpush.msra.mxu0 %v814
          %840 = vmatpush.msra.mxu0 %v813
          %841 = vmatmul.f32.gmra.mxu0 %v823
          %v842 = vpop.f32.mrf.mxu0
          %v843 = vadd.f32 %v819, %v842
          %844 = vdwg.mxu0
          %v845 = vmax.f32 %v843, 0.0
          %v846 = vld [vmem:[%s6] sm:$0xff]
          %v847 = vld [vmem:[%s6 + $0x8] sm:$0xff]
          %v848 = vld [vmem:[%s6 + $0x10] sm:$0xff]
          %v849 = vld [vmem:[%s6 + $0x18] sm:$0xff]
          %v850 = vld [vmem:[%s6 + $0x20] sm:$0xff]
          %v851 = vld [vmem:[%s6 + $0x28] sm:$0xff]
          %v852 = vld [vmem:[%s6 + $0x30] sm:$0xff]
          %v853 = vld [vmem:[%s6 + $0x38] sm:$0xff]
          %v854 = vld [vmem:[%s7] sm:$0x1]
          %v856 = vperm.slane %v854, 0
          %vm858 = vcmask 523264
          %v860 = vsel %vm858, %v845, 0
          %862 = vmatpush.msra.mxu0 0.0
          %863 = vmatpush.msra.mxu0 0.0
          %864 = vmatpush.msra.mxu0 0.0
          %865 = vmatpush.msra.mxu0 0.0
          %866 = vmatpush.msra.mxu0 0.0
          %867 = vmatpush.msra.mxu0 0.0
          %868 = vmatpush.msra.mxu0 0.0
          %869 = vmatpush.msra.mxu0 0.0
          %870 = vmatpush.msra.mxu0 %v853
          %871 = vmatpush.msra.mxu0 %v852
          %872 = vmatpush.msra.mxu0 %v851
          %873 = vmatpush.msra.mxu0 %v850
          %874 = vmatpush.msra.mxu0 %v849
          %875 = vmatpush.msra.mxu0 %v848
          %876 = vmatpush.msra.mxu0 %v847
          %877 = vmatpush.msra.mxu0 %v846
          %878 = vmatmul.f32.gmra.mxu0 %v860
          %v879 = vpop.f32.mrf.mxu0
          %v880 = vadd.f32 %v856, %v879
          %881 = vdwg.mxu0
          %v882 = vmax.f32 %v880, 0.0
          %v883 = vld [vmem:[%s8] sm:$0xff]
          %v884 = vld [vmem:[%s8 + $0x8] sm:$0xff]
          %v885 = vld [vmem:[%s8 + $0x10] sm:$0xff]
          %v886 = vld [vmem:[%s8 + $0x18] sm:$0xff]
          %v887 = vld [vmem:[%s8 + $0x20] sm:$0xff]
          %v888 = vld [vmem:[%s8 + $0x28] sm:$0xff]
          %v889 = vld [vmem:[%s8 + $0x30] sm:$0xff]
          %v890 = vld [vmem:[%s8 + $0x38] sm:$0xff]
          %v891 = vld [vmem:[%s9] sm:$0x1]
          %v893 = vperm.slane %v891, 0
          %v896 = vsel %vm858, %v882, 0
          %898 = vmatpush.msra.mxu0 0.0
          %899 = vmatpush.msra.mxu0 0.0
          %900 = vmatpush.msra.mxu0 0.0
          %901 = vmatpush.msra.mxu0 0.0
          %902 = vmatpush.msra.mxu0 0.0
          %903 = vmatpush.msra.mxu0 0.0
          %904 = vmatpush.msra.mxu0 0.0
          %905 = vmatpush.msra.mxu0 0.0
          %906 = vmatpush.msra.mxu0 %v890
          %907 = vmatpush.msra.mxu0 %v889
          %908 = vmatpush.msra.mxu0 %v888
          %909 = vmatpush.msra.mxu0 %v887
          %910 = vmatpush.msra.mxu0 %v886
          %911 = vmatpush.msra.mxu0 %v885
          %912 = vmatpush.msra.mxu0 %v884
          %913 = vmatpush.msra.mxu0 %v883
          %914 = vmatmul.f32.gmra.mxu0 %v896
          %v915 = vpop.f32.mrf.mxu0
          %v916 = vadd.f32 %v893, %v915
          %917 = vdwg.mxu0
          %918 = vst [vmem:[#allocation6] sm:$0x3] %v916
        $region120: #{tpu_custom_call.1} parent=103 // pred_fallthru
          _
        // Predicated region
        $region121: #{tpu_custom_call.1} parent=103 // pred_check
          %p919 = pneg %p271
        $region122: #{tpu_custom_call.1} parent=103 // pred_check_branch
          %921 = sbr.rel (%p919) target = $region124
        $region123: #{tpu_custom_call.1} parent=103 // pred_region
          %923 = vsyncadd [#allocation7], 0
          %s924 = smul.addr %s27, 2
          %s925 = scalar_lea.hbm %s10, %s924
          %s927 = sshll.u32 [#allocation6], 4
          %s928 = int_to_ptr.vmem [resolvable:$true] %s927
          %s929 = sshll.u32 %s925, 4
          %s930 = int_to_ptr.hbm [resolvable:$true] %s929
          %932 = dma.vmem_to_hbm [thread:$0]  %s928, 32, %s930, [#allocation7]
        $region124: #{tpu_custom_call.1} parent=103 // pred_fallthru
          _
        // Predicated region
        $region125: #{tpu_custom_call.1} parent=103 // pred_check
          %p933 = pneg %p271
        $region126: #{tpu_custom_call.1} parent=103 // pred_check_branch
          %935 = sbr.rel (%p933) target = $region128
        $region127: #{tpu_custom_call.1} parent=103 // pred_region
          %937 = dma.done [#allocation7], 32
        $region128: #{tpu_custom_call.1} parent=103 // pred_fallthru
          _
      $region104: #{tpu_custom_call.1} parent=5 // pred_fallthru
        _
      %p938 = scmp.le.s32.totalorder 2, %s18
      // Predicated region
      $region129: #{tpu_custom_call.1} parent=5 // pred_check
        %p939 = pneg %p938
      $region130: #{tpu_custom_call.1} parent=5 // pred_check_branch
        %941 = sbr.rel (%p939) target = $region132
      $region131: #{tpu_custom_call.1} parent=5 // pred_region
        %s942 = ssub.s32 %s18, 2
      $region132: #{tpu_custom_call.1} parent=5 // pred_fallthru
        _
    $region6: #{tpu_custom_call.1} parent=1 // loop_footer
      %s22 = sadd.s32 1, %s18
    $region7: #{tpu_custom_call.1} parent=1 // loop_footer_branch
      %17 = sbr.rel target = $region3
    $region8: #{tpu_custom_call.1} parent=1 // loop_exit
      _
    %943 = vsyncpa [#allocation7], 1
    %s944 = scalar_lea.sflag [#allocation7], 1
    %945 = vsyncpa %s944, 1

</llo_original>
